<compile_context>
chip_gen: v7x
topology: tpu7x:2x2x1
jax: 0.10.0
libtpu: 0.0.40
codegen_flags: <defaults>
</compile_context>

<pallas_src>
import functools

import jax
import jax.numpy as jnp
from jax.experimental import pallas as pl
from jax.experimental.pallas import tpu as pltpu


def _round_up(x, m):
    return (x + m - 1) // m * m


def _cdiv(a, b):
    return (a + b - 1) // b


def _num_tensorcores():
    """Best-effort TensorCores-per-chip guess from the device kind string."""
    try:
        kind = jax.devices()[0].device_kind.lower()
    except Exception:  # pragma: no cover - defensive
        return 1
    return 2 if any(tag in kind for tag in ("v7", "tpu7", "7x")) else 1


def _common_body(packed_ref, area_ref, *, k_pad, num_kpts):
    """Shared per-tile math.  Returns loss [K_pad, TILE_N] (padded entries == 0)."""
    # packed rows = [px ; py ; gx ; gy ; mask], coords pre-scaled by 1/(2*sqrt(2)*sigma)
    px = packed_ref[0 * k_pad:1 * k_pad, :]
    py = packed_ref[1 * k_pad:2 * k_pad, :]
    gx = packed_ref[2 * k_pad:3 * k_pad, :]
    gy = packed_ref[3 * k_pad:4 * k_pad, :]
    mask = packed_ref[4 * k_pad:5 * k_pad, :]

    area = area_ref[...]                      # [1, TILE_N]

    dx = px - gx
    dy = py - gy
    # Coordinates were pre-scaled, so this is already d / (2*sigma)^2 / 2.
    e_scaled = dx * dx + dy * dy              # [K_pad, TILE_N]

    # kpt_loss_factor = K / (#nonzero mask per object + 1e-9)  -> [1, TILE_N]
    # (cheap sublane reduce over the small K axis)
    nonzero = jnp.sum((mask != 0).astype(jnp.float32), axis=0, keepdims=True)
    factor = jnp.float32(num_kpts) * pl.reciprocal(nonzero + 1e-9, approx=False)

    inv_area = pl.reciprocal(area + 1e-9, approx=False)   # [1, TILE_N]

    e = e_scaled * inv_area
    return factor * ((1.0 - jnp.exp(-e)) * mask)


def _kpt_loss_acc_kernel(packed_ref, area_ref, out_ref, acc_ref, *,
                         k_pad, num_kpts, inv_count):
    """Single-TC variant: running [1, TILE_N] vector accumulator, scalar out."""
    i = pl.program_id(0)

    @pl.when(i == 0)
    def _():
        acc_ref[...] = jnp.zeros_like(acc_ref)

    loss = _common_body(packed_ref, area_ref, k_pad=k_pad, num_kpts=num_kpts)

    # Per-step: only a sublane (K) reduce; the cross-lane reduce happens once.
    acc_ref[...] += jnp.sum(loss, axis=0, keepdims=True)

    @pl.when(i == pl.num_programs(0) - 1)
    def _():
        out_ref[0] = jnp.sum(acc_ref[...]) * jnp.float32(inv_count)


def _kpt_loss_partial_kernel(packed_ref, area_ref, out_ref, *,
                             k_pad, num_kpts, inv_count):
    """Multi-TC variant: per-tile partial (already scaled by 1/(N*K))."""
    loss = _common_body(packed_ref, area_ref, k_pad=k_pad, num_kpts=num_kpts)
    out_ref[0] = jnp.sum(loss) * jnp.float32(inv_count)


def keypoint_loss(pred_kpts, gt_kpts, kpt_mask, area, sigmas, *, max_tile_n=8192):
    """pred_kpts, gt_kpts: [N, K, >=2]; kpt_mask: [N, K]; area: [N, 1]; sigmas: [K]."""
    n, k = kpt_mask.shape
    k_pad = _round_up(k, 8)
    f32 = jnp.float32

    # ---- N tiling: minimal zero-padding (<= ~128 cols per tile), and on
    #      multi-TensorCore chips make the tile count even so the "parallel"
    #      grid axis can shard across both cores.
    n_128 = _round_up(max(n, 1), 128)
    num_tiles = _cdiv(n_128, max_tile_n)
    multi_core = _num_tensorcores() > 1
    if multi_core and n_128 >= 2 * 128:
        num_tiles = _round_up(num_tiles, 2)
    tile_n = _round_up(_cdiv(n_128, num_tiles), 128)
    num_tiles = _cdiv(n_128, tile_n)          # avoid creating empty tiles
    n_pad = num_tiles * tile_n

    # ---- Fold sigma scaling into the packing fusion:
    #      e = d / (2*sigma)^2 / 2  ==  ((px-gx)*s)^2 + ((py-gy)*s)^2  with
    #      s = 1 / (2*sqrt(2)*sigma).  Padded sigmas = 1.0 keep scales finite.
    sig = jnp.pad(sigmas.reshape(k).astype(f32), (0, k_pad - k),
                  constant_values=1.0)
    coord_scale = 1.0 / (2.0 * jnp.sqrt(jnp.float32(2.0)) * sig)   # [K_pad]
    cs = coord_scale[:k]                                           # true-K rows

    px = pred_kpts[..., 0].astype(f32) * cs
    py = pred_kpts[..., 1].astype(f32) * cs
    gx = gt_kpts[..., 0].astype(f32) * cs
    gy = gt_kpts[..., 1].astype(f32) * cs

    # Pack the 5 planes lane-dense (N on lanes): [5, K, N] -> [5*K_pad, N_pad].
    planes = jnp.stack([px, py, gx, gy, kpt_mask.astype(f32)], axis=0)  # [5, N, K]
    planes = jnp.transpose(planes, (0, 2, 1))                           # [5, K, N]
    planes = jnp.pad(planes, ((0, 0), (0, k_pad - k), (0, n_pad - n)))
    packed = planes.reshape(5 * k_pad, n_pad)                           # one DMA stream
    # TODO(synk): if the producer can emit keypoints channels-first ([K, N]),
    # delete this stack/transpose/pad pass entirely.

    area_row = jnp.pad(area.reshape(1, n).astype(f32),
                       ((0, 0), (0, n_pad - n)))                        # [1, N_pad]

    inv_count = 1.0 / float(n * k)   # true (unpadded) element count for the mean

    bytes_accessed = 4 * (packed.size + area_row.size + max(num_tiles, 1))
    cost = pl.CostEstimate(flops=9 * n_pad * k_pad,
                           transcendentals=n_pad * k_pad,
                           bytes_accessed=bytes_accessed)

    in_specs = [
        pl.BlockSpec((5 * k_pad, tile_n), lambda i: (0, i)),   # packed slab
        pl.BlockSpec((1, tile_n), lambda i: (0, i)),           # area row
    ]

    if multi_core and num_tiles > 1:
        # v7x path: per-tile partials, shard the grid axis across both TCs.
        kernel = functools.partial(_kpt_loss_partial_kernel, k_pad=k_pad,
                                   num_kpts=k, inv_count=inv_count)
        partials = pl.pallas_call(
            kernel,
            out_shape=jax.ShapeDtypeStruct((num_tiles,), f32),
            grid=(num_tiles,),
            in_specs=in_specs,
            out_specs=pl.BlockSpec((1,), lambda i: (i,),
                                   memory_space=pltpu.MemorySpace.SMEM),
            compiler_params=pltpu.CompilerParams(
                dimension_semantics=("parallel",)),
            cost_estimate=cost,
        )(packed, area_row)
        return jnp.sum(partials)

    # Single-TC path (v5e/v6e) or single-tile grid: accumulate in VMEM, write
    # one scalar with the mean already folded in (no follow-up XLA sum/divide).
    kernel = functools.partial(_kpt_loss_acc_kernel, k_pad=k_pad,
                               num_kpts=k, inv_count=inv_count)
    out = pl.pallas_call(
        kernel,
        out_shape=jax.ShapeDtypeStruct((1,), f32),
        grid=(num_tiles,),
        in_specs=in_specs,
        out_specs=pl.BlockSpec((1,), lambda i: (0,),
                               memory_space=pltpu.MemorySpace.SMEM),
        scratch_shapes=[pltpu.VMEM((1, tile_n), f32)],
        compiler_params=pltpu.CompilerParams(
            dimension_semantics=("arbitrary",)),
        cost_estimate=cost,
    )(packed, area_row)
    return out[0]


def keypoint_loss_ref(pred_kpts, gt_kpts, kpt_mask, area, sigmas):
    """Pure-JAX reference matching the PyTorch module."""
    d = (pred_kpts[..., 0] - gt_kpts[..., 0]) ** 2 + (pred_kpts[..., 1] - gt_kpts[..., 1]) ** 2
    kpt_loss_factor = kpt_mask.shape[1] / (jnp.sum(kpt_mask != 0, axis=1) + 1e-9)
    e = d / (2 * sigmas) ** 2 / (area + 1e-9) / 2
    return jnp.mean(kpt_loss_factor.reshape(-1, 1) * ((1 - jnp.exp(-e)) * kpt_mask))


if __name__ == "__main__":
    key = jax.random.PRNGKey(0)
    N, K = 2, 8  # 2 objects, 8 keypoints each

    k1, k2, k3, k4 = jax.random.split(key, 4)
    pred_kpts = jax.random.uniform(k1, (N, K, 2), jnp.float32) * 16.0
    gt_kpts = jax.random.uniform(k2, (N, K, 2), jnp.float32) * 16.0
    kpt_mask = (jax.random.uniform(k3, (N, K)) > 0.3).astype(jnp.float32)
    area = jax.random.uniform(k4, (N, 1), jnp.float32) * 100.0 + 1.0
    # Deterministic sigmas (shape [K]) as in the module's __init__ signature.
    sigmas = jnp.linspace(0.025, 0.1, K, dtype=jnp.float32)

    out = keypoint_loss(pred_kpts, gt_kpts, kpt_mask, area, sigmas)
    out = jax.block_until_ready(out)

    ref = keypoint_loss_ref(pred_kpts, gt_kpts, kpt_mask, area, sigmas)
    assert jnp.allclose(out, ref, rtol=1e-5, atol=1e-6), (out, ref)

    print("KERNEL_OK")
</pallas_src>

<mosaic_0001>
module attributes {stable_mosaic.version = 11 : i64} {
  func.func @_kpt_loss_acc_kernel(%arg0: i32, %arg1: memref<40x128xf32, #tpu.memory_space<vmem>>, %arg2: memref<1x128xf32, #tpu.memory_space<vmem>>, %arg3: memref<1xf32, #tpu.memory_space<smem>>, %arg4: memref<1x128xf32, #tpu.memory_space<vmem>>) attributes {dimension_semantics = [#tpu.dimension_semantics<arbitrary>], iteration_bounds = array<i64: 1>, scalar_prefetch = 0 : i64, scratch_operands = 1 : i64, tpu.core_type = #tpu.core_type<tc>, window_params = [{transform_indices = @transform_0, window_bounds = array<i64: 40, 128>}, {transform_indices = @transform_1, window_bounds = array<i64: 1, 128>}, {transform_indices = @transform_2, window_bounds = array<i64: 1>}]} {
    %c0_i32 = arith.constant 0 : i32
    %0 = arith.cmpi eq, %arg0, %c0_i32 : i32
    %1 = arith.extui %0 : i1 to i32
    %c0_i32_0 = arith.constant 0 : i32
    %2 = arith.cmpi ne, %1, %c0_i32_0 : i32
    scf.if %2 {
      %cst_21 = arith.constant 0.000000e+00 : f32
      %46 = vector.broadcast %cst_21 : f32 to vector<1x128xf32>
      %c0_22 = arith.constant 0 : index
      %c0_23 = arith.constant 0 : index
      %47 = vector.load %arg4[%c0_22, %c0_23] : memref<1x128xf32, #tpu.memory_space<vmem>>, vector<1x128xf32>
      tpu.vector_store %arg4[%c0_22, %c0_23], %46 {strides = array<i32>} : memref<1x128xf32, #tpu.memory_space<vmem>>, vector<1x128xf32>,
    } else {
    }
    %c0 = arith.constant 0 : index
    %c0_1 = arith.constant 0 : index
    %3 = vector.load %arg1[%c0, %c0_1] : memref<40x128xf32, #tpu.memory_space<vmem>>, vector<8x128xf32>
    %c8 = arith.constant 8 : index
    %c0_2 = arith.constant 0 : index
    %4 = vector.load %arg1[%c8, %c0_2] : memref<40x128xf32, #tpu.memory_space<vmem>>, vector<8x128xf32>
    %c16 = arith.constant 16 : index
    %c0_3 = arith.constant 0 : index
    %5 = vector.load %arg1[%c16, %c0_3] : memref<40x128xf32, #tpu.memory_space<vmem>>, vector<8x128xf32>
    %c24 = arith.constant 24 : index
    %c0_4 = arith.constant 0 : index
    %6 = vector.load %arg1[%c24, %c0_4] : memref<40x128xf32, #tpu.memory_space<vmem>>, vector<8x128xf32>
    %c32 = arith.constant 32 : index
    %c0_5 = arith.constant 0 : index
    %7 = vector.load %arg1[%c32, %c0_5] : memref<40x128xf32, #tpu.memory_space<vmem>>, vector<8x128xf32>
    %c0_6 = arith.constant 0 : index
    %c0_7 = arith.constant 0 : index
    %8 = vector.load %arg2[%c0_6, %c0_7] : memref<1x128xf32, #tpu.memory_space<vmem>>, vector<1x128xf32>
    %9 = arith.subf %3, %5 : vector<8x128xf32>
    %10 = arith.subf %4, %6 : vector<8x128xf32>
    %11 = arith.mulf %9, %9 : vector<8x128xf32>
    %12 = arith.mulf %10, %10 : vector<8x128xf32>
    %13 = arith.addf %11, %12 : vector<8x128xf32>
    %cst = arith.constant 0.000000e+00 : f32
    %14 = vector.broadcast %cst : f32 to vector<8x128xf32>
    %15 = arith.cmpf one, %7, %14 : vector<8x128xf32>
    %16 = arith.extui %15 : vector<8x128xi1> to vector<8x128xi32>
    %17 = arith.sitofp %16 : vector<8x128xi32> to vector<8x128xf32>
    %cst_8 = arith.constant dense<0.000000e+00> : vector<128xf32>
    %18 = vector.multi_reduction <add>, %17, %cst_8 [0] : vector<8x128xf32> to vector<128xf32>
    %19 = vector.shape_cast %18 : vector<128xf32> to vector<1x128xf32>
    %cst_9 = arith.constant 9.99999971E-10 : f32
    %20 = vector.broadcast %cst_9 : f32 to vector<1x128xf32>
    %21 = arith.addf %19, %20 : vector<1x128xf32>
    %22 = tpu.reciprocal %21 : vector<1x128xf32> -> vector<1x128xf32>
    %cst_10 = arith.constant 8.000000e+00 : f32
    %23 = vector.broadcast %cst_10 : f32 to vector<1x128xf32>
    %24 = arith.mulf %23, %22 : vector<1x128xf32>
    %cst_11 = arith.constant 9.99999971E-10 : f32
    %25 = vector.broadcast %cst_11 : f32 to vector<1x128xf32>
    %26 = arith.addf %8, %25 : vector<1x128xf32>
    %27 = tpu.reciprocal %26 : vector<1x128xf32> -> vector<1x128xf32>
    %28 = vector.broadcast %27 : vector<1x128xf32> to vector<8x128xf32>
    %29 = arith.mulf %13, %28 : vector<8x128xf32>
    %cst_12 = arith.constant 0.000000e+00 : f32
    %30 = vector.broadcast %cst_12 : f32 to vector<8x128xf32>
    %31 = arith.subf %30, %29 : vector<8x128xf32>
    %32 = math.exp %31 : vector<8x128xf32>
    %cst_13 = arith.constant 1.000000e+00 : f32
    %33 = vector.broadcast %cst_13 : f32 to vector<8x128xf32>
    %34 = arith.subf %33, %32 : vector<8x128xf32>
    %35 = arith.mulf %34, %7 : vector<8x128xf32>
    %36 = vector.broadcast %24 : vector<1x128xf32> to vector<8x128xf32>
    %37 = arith.mulf %36, %35 : vector<8x128xf32>
    %c0_14 = arith.constant 0 : index
    %c0_15 = arith.constant 0 : index
    %38 = vector.load %arg4[%c0_14, %c0_15] : memref<1x128xf32, #tpu.memory_space<vmem>>, vector<1x128xf32>
    %cst_16 = arith.constant dense<0.000000e+00> : vector<128xf32>
    %39 = vector.multi_reduction <add>, %37, %cst_16 [0] : vector<8x128xf32> to vector<128xf32>
    %40 = vector.shape_cast %39 : vector<128xf32> to vector<1x128xf32>
    %41 = arith.addf %38, %40 : vector<1x128xf32>
    %c0_17 = arith.constant 0 : index
    %c0_18 = arith.constant 0 : index
    %42 = vector.load %arg4[%c0_17, %c0_18] : memref<1x128xf32, #tpu.memory_space<vmem>>, vector<1x128xf32>
    tpu.vector_store %arg4[%c0_17, %c0_18], %41 {strides = array<i32>} : memref<1x128xf32, #tpu.memory_space<vmem>>, vector<1x128xf32>,
    %c0_i32_19 = arith.constant 0 : i32
    %43 = arith.cmpi eq, %arg0, %c0_i32_19 : i32
    %44 = arith.extui %43 : i1 to i32
    %c0_i32_20 = arith.constant 0 : i32
    %45 = arith.cmpi ne, %44, %c0_i32_20 : i32
    scf.if %45 {
      %c0_21 = arith.constant 0 : index
      %c0_22 = arith.constant 0 : index
      %46 = vector.load %arg4[%c0_21, %c0_22] : memref<1x128xf32, #tpu.memory_space<vmem>>, vector<1x128xf32>
      %47 = vector.shape_cast %46 : vector<1x128xf32> to vector<1x1x128xf32>
      %cst_23 = arith.constant dense<0.000000e+00> : vector<1xf32>
      %48 = vector.multi_reduction <add>, %47, %cst_23 [1, 2] : vector<1x1x128xf32> to vector<1xf32>
      %49 = vector.shape_cast %48 : vector<1xf32> to vector<1x1x1xf32>
      %50 = vector.extract %49[0, 0, 0] : f32 from vector<1x1x1xf32>
      %cst_24 = arith.constant 6.250000e-02 : f32
      %51 = arith.mulf %50, %cst_24 : f32
      %c0_25 = arith.constant 0 : index
      %52 = memref.load %arg3[%c0_25] : memref<1xf32, #tpu.memory_space<smem>>
      memref.store %51, %arg3[%c0_25] : memref<1xf32, #tpu.memory_space<smem>>
    } else {
    }
    return
  }
  func.func @transform_0(%arg0: i32) -> (i32, i32) {
    %c0_i32 = arith.constant 0 : i32
    %c0_i32_0 = arith.constant 0 : i32
    return %c0_i32, %arg0 : i32, i32
  }
  func.func @transform_1(%arg0: i32) -> (i32, i32) {
    %c0_i32 = arith.constant 0 : i32
    %c0_i32_0 = arith.constant 0 : i32
    return %c0_i32, %arg0 : i32, i32
  }
  func.func @transform_2(%arg0: i32) -> i32 {
    %c0_i32 = arith.constant 0 : i32
    %c0_i32_0 = arith.constant 0 : i32
    return %c0_i32 : i32
  }
}

</mosaic_0001>

<llo_original>
// kernel: tpu_custom_call.1
$region0: #{tpu_custom_call.1}
  #allocation0 [shape = 'u32[]', space=smem, size = 0x4, offset = 0x4, fixed_abs, tag = 'smem constant byte address 0x4 - core index']
  #allocation1 [shape = 'u32[144,128]{1,0:T(1,128)}', space=vmem, size = 0x12000, scoped, tag = 'internal scratch']
  #allocation2 [shape = 'f32[1,128]{1,0:T(1,128)}', space=vmem, size = 0x200, scoped, tag = 'scratch operand']
  %s0 = inlined_call_operand.hbm [shape: f32[40,128], index: 0, kind: input, shape index: {}]
  %s1 = inlined_call_operand.vmem [shape: f32[1,128], index: 1, kind: input, shape index: {}]
  %s2 = inlined_call_operand.hbm [shape: f32[1], index: 2, kind: output, shape index: {}]
  %s3 = sld [smem:[#allocation0]]
  $region30: #{tpu_custom_call.1} parent=0
    _
  %s5 = ssub.s32 1, %s3
  %s6 = scalar_select 0, %s5, %s3
  $region1: #{tpu_custom_call.1} parent=0
    #allocation3 [shape = 'u8[20480]{0}', space=vmem, size = 0x5000, scoped, tag = 'input window, operand 0, single buffered']
    #allocation4 [shape = 's32[1]{0}', space=sflag, size = 0x4, scoped, tag = 'scoped memory for tpu_custom_call.1']
    #allocation5 [shape = 's32[1]{0}', space=sflag, size = 0x4, scoped, tag = 'scoped memory for tpu_custom_call.1']
    #allocation6 [shape = 'u8[512]{0}', space=smem, size = 0x200, scoped, tag = 'output window, operand 0, single buffered']
    %7 = vsyncpa [#allocation4], 0
    %8 = vsyncpa [#allocation5], 0
    // Predicated region
    $region2: #{tpu_custom_call.1} parent=1 // pred_check
      _
    $region3: #{tpu_custom_call.1} parent=1 // pred_check_branch
      %10 = sbr.rel (0) target = $region5
    $region4: #{tpu_custom_call.1} parent=1 // pred_region
      %s12 = ssub.s32 640, 640
      %13 = vsyncadd [#allocation4], %s12
      %s14 = sshll.u32 [#allocation3], 4
      %s15 = int_to_ptr.vmem [resolvable:$true] %s14
      %20 = dma.hbm_to_vmem [thread:$0]  %s0, 640, %s15, [#allocation4], 128, 128, 8
    $region5: #{tpu_custom_call.1} parent=1 // pred_fallthru
      _
    // Predicated region
    $region6: #{tpu_custom_call.1} parent=1 // pred_check
      _
    $region7: #{tpu_custom_call.1} parent=1 // pred_check_branch
      %22 = sbr.rel (0) target = $region9
    $region8: #{tpu_custom_call.1} parent=1 // pred_region
      _
    $region9: #{tpu_custom_call.1} parent=1 // pred_fallthru
      _
    // Predicated region
    $region10: #{tpu_custom_call.1} parent=1 // pred_check
      _
    $region11: #{tpu_custom_call.1} parent=1 // pred_check_branch
      %24 = sbr.rel (0) target = $region13
    $region12: #{tpu_custom_call.1} parent=1 // pred_region
      %25 = dma.done [#allocation4], 640
    $region13: #{tpu_custom_call.1} parent=1 // pred_fallthru
      _
    %p26 = scmp.eq.s32.totalorder 0, 0
    // Predicated region
    $region14: #{tpu_custom_call.1} parent=1 // pred_check
      %p27 = pneg %p26
    $region15: #{tpu_custom_call.1} parent=1 // pred_check_branch
      %29 = sbr.rel (%p27) target = $region17
    $region16: #{tpu_custom_call.1} parent=1 // pred_region
      %30 = vst [vmem:[#allocation2] sm:$0x1] 0.0
    $region17: #{tpu_custom_call.1} parent=1 // pred_fallthru
      _
    %v31 = vld [vmem:[#allocation3] sm:$0xff]
    %v32 = vld [vmem:[#allocation3 + $0x8] sm:$0xff]
    %v33 = vld [vmem:[#allocation3 + $0x10] sm:$0xff]
    %v34 = vld [vmem:[#allocation3 + $0x18] sm:$0xff]
    %v35 = vld [vmem:[#allocation3 + $0x20] sm:$0xff]
    %v36 = vld [vmem:[%s1] sm:$0x1]
    %v37 = vsub.f32 %v31, %v33
    %v38 = vsub.f32 %v32, %v34
    %v39 = vmul.f32 %v37, %v37
    %v40 = vmul.f32 %v38, %v38
    %v41 = vadd.f32 %v39, %v40
    %vm42 = vcmp.ne.f32.partialorder %v35, 0.0
    %v43 = vsel %vm42, 1, 0
    %v44 = vcvt.s32.f32 %v43
    %v45 = vrot.slane %v44, 4
    %v46 = vadd.f32 %v44, %v45
    %v47 = vrot.slane %v46, 2
    %v48 = vadd.f32 %v46, %v47
    %v49 = vrot.slane %v48, 1
    %v50 = vadd.f32 %v48, %v49
    %v51 = vadd.f32 %v50, 1e-09
    %v52 = vrcp.pop %v51
    %v53 = vmul.f32 %v52, 8.0
    %v54 = vadd.f32 %v36, 1e-09
    %v55 = vrcp.pop %v54
    %v57 = vlaneseq
    %v58 = vshrl.u32 %v57, 7
    %v59 = vsub.s32 0, %v58
    %v60 = vrot.slane %v55, %v59
    %v62 = vmul.f32 %v41, %v60
    %v63 = vsub.f32 0.0, %v62
    %v64 = vmul.f32 %v63, 1.442695
    %v65 = vpow.pop %v64
    %v66 = vsub.f32 1.0, %v65
    %v67 = vmul.f32 %v66, %v35
    %v68 = vmul.f32 %v53, %v67
    %v69 = vld [vmem:[#allocation2] sm:$0x1]
    %v70 = vrot.slane %v68, 4
    %v71 = vadd.f32 %v68, %v70
    %v72 = vrot.slane %v71, 2
    %v73 = vadd.f32 %v71, %v72
    %v74 = vrot.slane %v73, 1
    %v75 = vadd.f32 %v73, %v74
    %v76 = vadd.f32 %v69, %v75
    %77 = vst [vmem:[#allocation2] sm:$0x1] %v76
    // Predicated region
    $region18: #{tpu_custom_call.1} parent=1 // pred_check
      %p78 = pneg %p26
    $region19: #{tpu_custom_call.1} parent=1 // pred_check_branch
      %80 = sbr.rel (%p78) target = $region21
    $region20: #{tpu_custom_call.1} parent=1 // pred_region
      %v81 = vld [vmem:[#allocation2] sm:$0x1]
      %vm82 = vcmask 1040384
      %v83 = vsel %vm82, %v81, 0.0
      %84 = vadd.xlane.f32.xlu0 %v83
      %v85 = vpop.xlane.xlu0 %84
      %v86 = vrot.slane %v85, 4
      %v87 = vadd.f32 %v85, %v86
      %v88 = vrot.slane %v87, 2
      %v89 = vadd.f32 %v87, %v88
      %v90 = vrot.slane %v89, 1
      %v91 = vadd.f32 %v89, %v90
      %s92 = vtos %v91
      %s93 = smul.f32 %s92, 0.0625
      %s94 = scalar_lea.smem [#allocation6], 0
      %95 = sst [smem:[%s94]] %s93
    $region21: #{tpu_custom_call.1} parent=1 // pred_fallthru
      _
    // Predicated region
    $region22: #{tpu_custom_call.1} parent=1 // pred_check
      _
    $region23: #{tpu_custom_call.1} parent=1 // pred_check_branch
      %97 = sbr.rel (0) target = $region25
    $region24: #{tpu_custom_call.1} parent=1 // pred_region
      %s99 = ssub.s32 16, 16
      %100 = vsyncadd [#allocation5], %s99
      %103 = dma.smem_to_hbm [#allocation6], 16, %s2, [#allocation5]
    $region25: #{tpu_custom_call.1} parent=1 // pred_fallthru
      _
    // Predicated region
    $region26: #{tpu_custom_call.1} parent=1 // pred_check
      _
    $region27: #{tpu_custom_call.1} parent=1 // pred_check_branch
      %105 = sbr.rel (0) target = $region29
    $region28: #{tpu_custom_call.1} parent=1 // pred_region
      %106 = dma.done [#allocation5], 16
    $region29: #{tpu_custom_call.1} parent=1 // pred_fallthru
      _
    %107 = sfence
    %108 = vsyncpa [#allocation4], 1
    %109 = vsyncpa [#allocation5], 1

</llo_original>
